<compile_context>
chip_gen: v6e
topology: v6e:2x2x1
jax: 0.10.0
libtpu: 0.0.40
codegen_flags: <defaults>
</compile_context>

<pallas_src>
import jax
import jax.numpy as jnp
from jax.experimental import pallas as pl
from jax.experimental.pallas import tpu as pltpu


def _pa_kernel(x_ref, w_ref, b_ref, o_ref):
    """One (RB, T) block: conv1x1 (block-diag MXU matmul) + sigmoid + mul + leaky_relu(0.2).

    RB = nb*C rows (sublane-dense images x channels), T pixels on lanes.
    """
    x = x_ref[...]                                    # (RB, T)  input dtype
    w = w_ref[...]                                    # (RB, RB) block-diagonal, input dtype
    b = b_ref[...]                                    # (RB, 1)  float32

    # 1x1 conv == per-pixel channel mixing: one MXU matmul, f32 accumulation.
    att = jnp.dot(w, x, preferred_element_type=jnp.float32) + b
    # Heavy VALU work (mul / compare / select) stays in the input dtype
    # (bf16 on v6e/v7x halves VALU-ops-per-HBM-byte); exp/recip ride the EUP.
    att = jax.nn.sigmoid(att).astype(x.dtype)
    y = x * att
    o_ref[...] = jnp.where(y >= 0, y, 0.2 * y).astype(o_ref.dtype)


def _choose_blocks(N, C, HW, itemsize, target_bytes=4 * 1024 * 1024):
    """Pick (nb images per block, pixel tile).

    Blocks are large (DMA-efficient), sublane-dense (nb*C % 8 == 0 when
    possible) and layout-legal: row block is a multiple of 8 or the full row
    extent; pixel block is a multiple of 128 or the full H*W extent.
    """
    # Smallest image group whose row count nb*C is a multiple of 8.
    nb0 = N                                   # full row extent is always legal
    for nb in range(1, N + 1):
        if N % nb == 0 and (nb * C) % 8 == 0:
            nb0 = nb
            break

    group_row_bytes = nb0 * C * itemsize
    if group_row_bytes * HW >= target_bytes:
        # Large feature maps: keep the minimal row group, tile the pixel axis.
        tile_hw = (target_bytes // group_row_bytes) // 128 * 128
        tile_hw = max(128, tile_hw)
        if tile_hw >= HW:
            tile_hw = HW
        return nb0, int(tile_hw)

    # Small feature maps: full pixel extent, pack several images per block.
    tile_hw = HW
    valid = [m * nb0 for m in range(1, N // nb0 + 1) if N % (m * nb0) == 0]
    nb = nb0
    for v in valid:
        if v * C * HW * itemsize <= target_bytes:
            nb = v
    # Back off a little so the grid keeps >=4 steps (pipelining + megacore),
    # as long as blocks remain comfortably large.
    for v in sorted(valid, reverse=True):
        if v <= nb and (N // v) >= 4 and v * C * HW * itemsize >= (512 * 1024):
            nb = v
            break
    return nb, tile_hw


@jax.jit
def pa_forward(x_nchw, weight, bias):
    """
    x_nchw : (N, C, H, W)  float32 / bfloat16
    weight : (C, C)        conv1x1 weight squeezed from (C, C, 1, 1)
    bias   : (C,)
    """
    N, C, H, W = x_nchw.shape
    assert weight.shape == (C, C), "PA expects a square (C_out == C_in) 1x1 conv weight"
    assert bias.shape == (C,)

    HW = H * W
    x2 = x_nchw.reshape(N * C, HW)            # free view: contiguous collapse, no transpose

    nb, tile_hw = _choose_blocks(N, C, HW, x_nchw.dtype.itemsize)
    rb = nb * C

    # Block-diagonal weight: one MXU matmul mixes channels of nb images at once
    # while keeping rows sublane-dense.  Bias replicated per image, kept in f32.
    w_big = jnp.kron(jnp.eye(nb, dtype=jnp.float32), weight.astype(jnp.float32))
    w_big = w_big.astype(x_nchw.dtype)
    b_big = jnp.tile(bias.astype(jnp.float32), nb).reshape(rb, 1)

    grid = (N // nb, pl.cdiv(HW, tile_hw))
    block_bytes = rb * tile_hw * x_nchw.dtype.itemsize
    vmem_limit = int(min(48 * 1024 * 1024, max(16 * 1024 * 1024, 8 * block_bytes)))

    out2 = pl.pallas_call(
        _pa_kernel,
        out_shape=jax.ShapeDtypeStruct((N * C, HW), x_nchw.dtype),
        grid_spec=pltpu.PrefetchScalarGridSpec(
            num_scalar_prefetch=0,
            grid=grid,
            in_specs=[
                pl.BlockSpec((rb, tile_hw), lambda i, j: (i, j)),   # x tile
                pl.BlockSpec((rb, rb), lambda i, j: (0, 0)),        # weight (VMEM-resident)
                pl.BlockSpec((rb, 1), lambda i, j: (0, 0)),         # bias   (VMEM-resident)
            ],
            out_specs=pl.BlockSpec((rb, tile_hw), lambda i, j: (i, j)),
        ),
        compiler_params=pltpu.CompilerParams(
            dimension_semantics=("parallel", "parallel"),
            vmem_limit_bytes=vmem_limit,
        ),
    )(x2, w_big, b_big)

    return out2.reshape(N, C, H, W)


def _pa_reference(x_nchw, weight, bias):
    """Pure-JAX reference matching the PyTorch forward (exact-precision conv)."""
    att = jnp.einsum("nchw,oc->nohw", x_nchw, weight,
                     precision=jax.lax.Precision.HIGHEST)
    att = att + bias[None, :, None, None]
    att = jax.nn.sigmoid(att)
    y = x_nchw * att
    return jnp.where(y >= 0, y, 0.2 * y)


if __name__ == "__main__":
    key = jax.random.PRNGKey(0)
    k_x, k_w, k_b = jax.random.split(key, 3)

    N, C, H, W = 2, 4, 16, 16
    x = jax.random.normal(k_x, (N, C, H, W), dtype=jnp.float32)

    # Deterministic parameter init (shapes from nn.Conv2d(cin, cin, kernel_size=1)).
    bound = 1.0 / (C ** 0.5)
    weight = jax.random.uniform(k_w, (C, C), minval=-bound, maxval=bound,
                                dtype=jnp.float32)   # (C_out, C_in) from (C, C, 1, 1)
    bias = jax.random.uniform(k_b, (C,), minval=-bound, maxval=bound,
                              dtype=jnp.float32)

    out = pa_forward(x, weight, bias)
    jax.block_until_ready(out)

    ref = _pa_reference(x, weight, bias)
    assert out.shape == (N, C, H, W)
    # 1e-4 tolerance: allows for MXU f32 pass rounding while still catching any
    # layout / logic error (those would be O(0.1) or larger).
    assert jnp.allclose(out, ref, atol=1e-4, rtol=1e-4), "mismatch vs reference"

    print("KERNEL_OK")
</pallas_src>

<mosaic_0001>
module attributes {stable_mosaic.version = 11 : i64} {
  func.func @_pa_kernel(%arg0: i32, %arg1: i32, %arg2: memref<8x256xf32, #tpu.memory_space<vmem>>, %arg3: memref<8x8xf32, #tpu.memory_space<vmem>>, %arg4: memref<8x1xf32, #tpu.memory_space<vmem>>, %arg5: memref<8x256xf32, #tpu.memory_space<vmem>>) attributes {dimension_semantics = [#tpu.dimension_semantics<parallel>, #tpu.dimension_semantics<parallel>], iteration_bounds = array<i64: 1, 1>, scalar_prefetch = 0 : i64, scratch_operands = 0 : i64, tpu.core_type = #tpu.core_type<tc>, window_params = [{transform_indices = @transform_0, window_bounds = array<i64: 8, 256>}, {pipeline_mode = #tpu.pipeline_mode<synchronous>, transform_indices = @transform_1, window_bounds = array<i64: 8, 8>}, {pipeline_mode = #tpu.pipeline_mode<synchronous>, transform_indices = @transform_2, window_bounds = array<i64: 8, 1>}, {transform_indices = @transform_3, window_bounds = array<i64: 8, 256>}]} {
    %c0 = arith.constant 0 : index
    %c0_0 = arith.constant 0 : index
    %0 = vector.load %arg2[%c0, %c0_0] : memref<8x256xf32, #tpu.memory_space<vmem>>, vector<8x256xf32>
    %c0_1 = arith.constant 0 : index
    %c0_2 = arith.constant 0 : index
    %1 = vector.load %arg3[%c0_1, %c0_2] : memref<8x8xf32, #tpu.memory_space<vmem>>, vector<8x8xf32>
    %c0_3 = arith.constant 0 : index
    %c0_4 = arith.constant 0 : index
    %2 = vector.load %arg4[%c0_3, %c0_4] : memref<8x1xf32, #tpu.memory_space<vmem>>, vector<8x1xf32>
    %cst = arith.constant dense<0.000000e+00> : vector<8x256xf32>
    %3 = tpu.matmul %1, %0, %cst {dimension_numbers = #tpu.dot_dimension_numbers<[1], [0], [0], [1], [0, 0, 1, 1], [], []>} : vector<8x8xf32>, vector<8x256xf32>, vector<8x256xf32> -> vector<8x256xf32>
    %4 = vector.broadcast %2 : vector<8x1xf32> to vector<8x256xf32>
    %5 = arith.addf %3, %4 : vector<8x256xf32>
    %6 = arith.negf %5 : vector<8x256xf32>
    %7 = math.exp %6 : vector<8x256xf32>
    %cst_5 = arith.constant 1.000000e+00 : f32
    %8 = vector.broadcast %cst_5 : f32 to vector<8x256xf32>
    %9 = arith.addf %8, %7 : vector<8x256xf32>
    %10 = arith.divf %8, %9 : vector<8x256xf32>
    %11 = arith.mulf %0, %10 : vector<8x256xf32>
    %cst_6 = arith.constant 0.000000e+00 : f32
    %12 = vector.broadcast %cst_6 : f32 to vector<8x256xf32>
    %13 = arith.cmpf oge, %11, %12 : vector<8x256xf32>
    %cst_7 = arith.constant 2.000000e-01 : f32
    %14 = vector.broadcast %cst_7 : f32 to vector<8x256xf32>
    %15 = arith.mulf %14, %11 : vector<8x256xf32>
    %16 = arith.select %13, %11, %15 : vector<8x256xi1>, vector<8x256xf32>
    %c0_8 = arith.constant 0 : index
    %c0_9 = arith.constant 0 : index
    %17 = vector.load %arg5[%c0_8, %c0_9] : memref<8x256xf32, #tpu.memory_space<vmem>>, vector<8x256xf32>
    tpu.vector_store %arg5[%c0_8, %c0_9], %16 {strides = array<i32>} : memref<8x256xf32, #tpu.memory_space<vmem>>, vector<8x256xf32>,
    return
  }
  func.func @transform_0(%arg0: i32, %arg1: i32) -> (i32, i32) {
    %c0_i32 = arith.constant 0 : i32
    return %arg0, %arg1 : i32, i32
  }
  func.func @transform_1(%arg0: i32, %arg1: i32) -> (i32, i32) {
    %c0_i32 = arith.constant 0 : i32
    %c0_i32_0 = arith.constant 0 : i32
    %c0_i32_1 = arith.constant 0 : i32
    return %c0_i32, %c0_i32_0 : i32, i32
  }
  func.func @transform_2(%arg0: i32, %arg1: i32) -> (i32, i32) {
    %c0_i32 = arith.constant 0 : i32
    %c0_i32_0 = arith.constant 0 : i32
    %c0_i32_1 = arith.constant 0 : i32
    return %c0_i32, %c0_i32_0 : i32, i32
  }
  func.func @transform_3(%arg0: i32, %arg1: i32) -> (i32, i32) {
    %c0_i32 = arith.constant 0 : i32
    return %arg0, %arg1 : i32, i32
  }
}

</mosaic_0001>

<llo_original>
// kernel: tile.8
$region0: #{tile.8}
  #allocation0 [shape = 's32[1]{0}', space=sflag, size = 0x4, scoped, tag = 'scoped memory for tile.8']
  %s0 = inlined_call_operand.vmem [shape: f32[4], index: 0, kind: input, shape index: {}]
  %s1 = inlined_call_operand.vmem [shape: f32[2,4], index: 1, kind: output, shape index: {}]
  // Predicated region
  $region2: #{tile.8} parent=0 // pred_check
    _
  $region3: #{tile.8} parent=0 // pred_check_branch
    %3 = sbr.rel (0) target = $region5
  $region4: #{tile.8} parent=0 // pred_region
    _
  $region5: #{tile.8} parent=0 // pred_fallthru
    _
  %v4 = vld [vmem:[%s0] ss:$0 sm:$0xff]
  %5 = vst [vmem:[%s1] sm:$0x3] %v4

// kernel: tile.0
$region0: #{tile.0}
  %s0 = inlined_call_operand.vmem [shape: f32[2,4], index: 0, kind: input, shape index: {}]
  %s1 = inlined_call_operand.vmem [shape: f32[8,1], index: 1, kind: output, shape index: {}]
  $region1: #{tile.0} parent=0
    #allocation0 [shape = 'u8[4096]{0}', space=vmem, size = 0x1000, scoped, tag = 'scoped mem for input reshape']
    %s3 = sshll.u32 1, 2
    %s4 = ssub.s32 %s3, 1
    %v5 = vld [vmem:[%s0] sm:%s4]
    %6 = vst [vmem:[#allocation0] sm:%s4] %v5
    %v7 = vld [vmem:[#allocation0] sm:$0x3]
    %vm8 = vcmask 7168
    %9 = vst.msk [vmem:[%s1] ss:$4 sm:$0x3] %vm8, %v7
    %v10 = vld [vmem:[#allocation0] sm:$0x3]
    %11 = vrot.lane.b32.xlu0 %v10, 127
    %v12 = vpop.permute.xlu0 %11
    %vm13 = vcmask 7168
    %s14 = scalar_lea.vmem %s1, 1
    %15 = vst.msk [vmem:[%s14] ss:$4 sm:$0x3] %vm13, %v12
    %v16 = vld [vmem:[#allocation0] sm:$0x3]
    %17 = vrot.lane.b32.xlu0 %v16, 126
    %v18 = vpop.permute.xlu0 %17
    %vm19 = vcmask 7168
    %s20 = scalar_lea.vmem %s1, 2
    %21 = vst.msk [vmem:[%s20] ss:$4 sm:$0x3] %vm19, %v18
    %v22 = vld [vmem:[#allocation0] sm:$0x3]
    %23 = vrot.lane.b32.xlu0 %v22, 125
    %v24 = vpop.permute.xlu0 %23
    %vm25 = vcmask 7168
    %s26 = scalar_lea.vmem %s1, 3
    %27 = vst.msk [vmem:[%s26] ss:$4 sm:$0x3] %vm25, %v24

// kernel: pa_forward.1
$region0: #{pa_forward.1}
  #allocation0 [shape = 'u32[]', space=smem, size = 0x4, offset = 0x4, fixed_abs, tag = 'smem constant byte address 0x4 - core index']
  #allocation1 [shape = 'u32[144,128]{1,0:T(1,128)}', space=vmem, size = 0x12000, scoped, tag = 'internal scratch']
  %s0 = inlined_call_operand.vmem [shape: f32[8,256], index: 0, kind: input, shape index: {}]
  %s1 = inlined_call_operand.vmem [shape: f32[8,8], index: 1, kind: input, shape index: {}]
  %s2 = inlined_call_operand.vmem [shape: f32[8,1], index: 2, kind: input, shape index: {}]
  %s3 = inlined_call_operand.vmem [shape: f32[8,256], index: 3, kind: output, shape index: {}]
  %s4 = sld [smem:[#allocation0]]
  $region22: #{pa_forward.1} parent=0
    _
  %s6 = ssub.s32 1, %s4
  %s7 = scalar_select 0, %s6, %s4
  // Predicated region
  $region2: #{pa_forward.1} parent=0 // pred_check
    _
  $region3: #{pa_forward.1} parent=0 // pred_check_branch
    %9 = sbr.rel (0) target = $region5
  $region4: #{pa_forward.1} parent=0 // pred_region
    _
  $region5: #{pa_forward.1} parent=0 // pred_fallthru
    _
  // Predicated region
  $region6: #{pa_forward.1} parent=0 // pred_check
    _
  $region7: #{pa_forward.1} parent=0 // pred_check_branch
    %11 = sbr.rel (0) target = $region9
  $region8: #{pa_forward.1} parent=0 // pred_region
    _
  $region9: #{pa_forward.1} parent=0 // pred_fallthru
    _
  // Predicated region
  $region10: #{pa_forward.1} parent=0 // pred_check
    _
  $region11: #{pa_forward.1} parent=0 // pred_check_branch
    %13 = sbr.rel (0) target = $region13
  $region12: #{pa_forward.1} parent=0 // pred_region
    _
  $region13: #{pa_forward.1} parent=0 // pred_fallthru
    _
  %v14 = vld [vmem:[%s0] sm:$0xff]
  %v15 = vld [vmem:[%s0 + $0x8] sm:$0xff]
  %v16 = vld [vmem:[%s1] sm:$0xff]
  %v17 = vld [vmem:[%s2] sm:$0xff]
  %19 = vset.pattern.permute.xlu0 0
  %20 = vperm.xlu0 %19, %v17
  %v21 = vpop.permute.xlu0 %20
  %vm23 = vcmask 64512
  %v25 = vsel %vm23, %v16, 0
  %27 = vmatprep.subr.mxu0 0.0
  %28 = vmatpush1.msra.mxu0 0.0
  %29 = vmatprep.subr.mxu0 0.0
  %30 = vmatpush1.msra.mxu0 0.0
  %31 = vmatprep.subr.mxu0 0.0
  %32 = vmatpush1.msra.mxu0 0.0
  %33 = vmatprep.subr.mxu0 0.0
  %34 = vmatpush1.msra.mxu0 0.0
  %35 = vmatprep.subr.mxu0 0.0
  %36 = vmatpush1.msra.mxu0 0.0
  %37 = vmatprep.subr.mxu0 0.0
  %38 = vmatpush1.msra.mxu0 0.0
  %39 = vmatprep.subr.mxu0 0.0
  %40 = vmatpush1.msra.mxu0 0.0
  %41 = vmatprep.subr.mxu0 0.0
  %42 = vmatpush1.msra.mxu0 0.0
  %43 = vmatprep.subr.mxu0 0.0
  %44 = vmatpush1.msra.mxu0 0.0
  %45 = vmatprep.subr.mxu0 0.0
  %46 = vmatpush1.msra.mxu0 0.0
  %47 = vmatprep.subr.mxu0 0.0
  %48 = vmatpush1.msra.mxu0 0.0
  %49 = vmatprep.subr.mxu0 0.0
  %50 = vmatpush1.msra.mxu0 0.0
  %51 = vmatprep.subr.mxu0 0.0
  %52 = vmatpush1.msra.mxu0 0.0
  %53 = vmatprep.subr.mxu0 0.0
  %54 = vmatpush1.msra.mxu0 0.0
  %55 = vmatprep.subr.mxu0 0.0
  %56 = vmatpush1.msra.mxu0 0.0
  %57 = vmatprep.subr.mxu0 %v15
  %58 = vmatpush1.msra.mxu0 %v14
  %59 = vmatprep.subr.mxu0 0.0
  %60 = vmatpush2.msra.mxu0 0.0
  %61 = vmatprep.subr.mxu0 0.0
  %62 = vmatpush2.msra.mxu0 0.0
  %63 = vmatprep.subr.mxu0 0.0
  %64 = vmatpush2.msra.mxu0 0.0
  %65 = vmatprep.subr.mxu0 0.0
  %66 = vmatpush2.msra.mxu0 0.0
  %67 = vmatprep.subr.mxu0 0.0
  %68 = vmatpush2.msra.mxu0 0.0
  %69 = vmatprep.subr.mxu0 0.0
  %70 = vmatpush2.msra.mxu0 0.0
  %71 = vmatprep.subr.mxu0 0.0
  %72 = vmatpush2.msra.mxu0 0.0
  %73 = vmatprep.subr.mxu0 0.0
  %74 = vmatpush2.msra.mxu0 0.0
  %75 = vmatprep.subr.mxu0 0.0
  %76 = vmatpush2.msra.mxu0 0.0
  %77 = vmatprep.subr.mxu0 0.0
  %78 = vmatpush2.msra.mxu0 0.0
  %79 = vmatprep.subr.mxu0 0.0
  %80 = vmatpush2.msra.mxu0 0.0
  %81 = vmatprep.subr.mxu0 0.0
  %82 = vmatpush2.msra.mxu0 0.0
  %83 = vmatprep.subr.mxu0 0.0
  %84 = vmatpush2.msra.mxu0 0.0
  %85 = vmatprep.subr.mxu0 0.0
  %86 = vmatpush2.msra.mxu0 0.0
  %87 = vmatprep.subr.mxu0 0.0
  %88 = vmatpush2.msra.mxu0 0.0
  %89 = vmatprep.subr.mxu0 0.0
  %90 = vmatpush2.msra.mxu0 0.0
  %91 = vmatprep.mubr.f32.mxu0 0.0
  %92 = vmatmul.mubr.f32.gmra.mxu0 %v25
  %v93 = vpop.f32.mrf.mxu0
  %v94 = vadd.f32 %v21, %v93
  %v95 = vpop.f32.mrf.mxu0
  %v96 = vadd.f32 %v21, %v95
  %97 = vdwg.mxu0
  %v98 = vxor.u32 %v94, 2147483648
  %v99 = vxor.u32 %v96, 2147483648
  %v100 = vmul.f32 %v98, 1.442695
  %v101 = vpow.pop %v100
  %v102 = vmul.f32 %v99, 1.442695
  %v103 = vpow.pop %v102
  %v104 = vadd.f32 %v101, 1.0
  %v105 = vadd.f32 %v103, 1.0
  %v106 = vrcp.pop %v104
  %v107 = vmul.f32 1.0, %v106
  %v108 = vrcp.pop %v105
  %v109 = vmul.f32 1.0, %v108
  %v110 = vmul.f32 %v14, %v107
  %v111 = vmul.f32 %v15, %v109
  %vm112 = vcmp.ge.f32.partialorder %v110, 0.0
  %vm113 = vcmp.ge.f32.partialorder %v111, 0.0
  %v114 = vmul.f32 %v110, 0.2
  %v115 = vmul.f32 %v111, 0.2
  %v116 = vsel %vm112, %v110, %v114
  %v117 = vsel %vm113, %v111, %v115
  %118 = vst [vmem:[%s3] sm:$0xff] %v116
  %119 = vst [vmem:[%s3 + $0x8] sm:$0xff] %v117
  // Predicated region
  $region14: #{pa_forward.1} parent=0 // pred_check
    _
  $region15: #{pa_forward.1} parent=0 // pred_check_branch
    %121 = sbr.rel (0) target = $region17
  $region16: #{pa_forward.1} parent=0 // pred_region
    _
  $region17: #{pa_forward.1} parent=0 // pred_fallthru
    _
  // Predicated region
  $region18: #{pa_forward.1} parent=0 // pred_check
    _
  $region19: #{pa_forward.1} parent=0 // pred_check_branch
    %123 = sbr.rel (0) target = $region21
  $region20: #{pa_forward.1} parent=0 // pred_region
    _
  $region21: #{pa_forward.1} parent=0 // pred_fallthru
    _

</llo_original>
